<compile_context>
chip_gen: v6e
topology: v6e:2x2x1
jax: 0.10.0
libtpu: 0.0.40
codegen_flags: <defaults>
</compile_context>

<pallas_src>
import functools

import jax
import jax.numpy as jnp
from jax.experimental import pallas as pl
from jax.experimental.pallas import tpu as pltpu


def _instance_norm_relu(y, mask, count):
    """Masked InstanceNorm2d (affine=False, eps=1e-5) + ReLU, channel-major.

    y    : (C, L) f32; columns where mask==0 contain garbage.
    mask : (1, L) f32; 1.0 at real output pixels, 0.0 at padding columns.
    count: number of valid columns (= H*W).
    Returns (C, L) f32 with zeros at the masked-out columns.
    """
    inv_count = 1.0 / float(count)
    mean = jnp.sum(y * mask, axis=1, keepdims=True) * inv_count       # (C, 1)
    yc = (y - mean) * mask                                            # garbage -> 0
    var = jnp.sum(yc * yc, axis=1, keepdims=True) * inv_count         # biased var
    return jnp.maximum(yc * jax.lax.rsqrt(var + 1e-5), 0.0)


def _double_conv_kernel(x_ref, w1_ref, w2_ref, mask_ref, o_ref,
                        p1_ref, pad2_ref, p2_ref, *, H, W, Cin, Cout):
    # x_ref   : (1, Cin, LP)   zero-padded flat image, LP = (H+3)*(W+2)
    # w1_ref  : (Cout, 9*Cin)  conv1 weights, column order (ky, kx, cin)
    # w2_ref  : (Cout, 9*Cout) conv2 weights
    # mask_ref: (1, L)         validity mask over flat output columns, L = H*(W+2)
    # o_ref   : (1, Cout, L)   channel-major flat output (incl. 2 garbage cols/row)
    # p*_ref  : im2col buffers; pad2_ref: padded conv1 activation (f32 VMEM).
    Wp = W + 2
    L = H * Wp
    count = H * W

    mask = mask_ref[...]                                   # (1, L) f32

    # ---- conv1: im2col = 9 contiguous lane slices of the padded image ----
    x = x_ref[0].astype(jnp.float32)                       # (Cin, LP)
    for dy in range(3):
        for dx in range(3):
            t = dy * 3 + dx
            off = dy * Wp + dx
            p1_ref[t * Cin:(t + 1) * Cin, :] = x[:, off:off + L]
    y1 = jnp.dot(w1_ref[...].astype(jnp.float32), p1_ref[...],
                 preferred_element_type=jnp.float32)       # (Cout, L)
    a1 = _instance_norm_relu(y1, mask, count)              # zeros at garbage cols

    # ---- re-pad conv1 activation in VMEM (never round-trips HBM) ---------
    # One contiguous store: the zeroed garbage columns of a1 land exactly on
    # the zero-padding positions of the conv2 input image.
    pad2_ref[...] = jnp.zeros_like(pad2_ref)
    pad2_ref[:, W + 3:W + 3 + L] = a1

    # ---- conv2 ------------------------------------------------------------
    pd = pad2_ref[...]                                     # (Cout, LP)
    for dy in range(3):
        for dx in range(3):
            t = dy * 3 + dx
            off = dy * Wp + dx
            p2_ref[t * Cout:(t + 1) * Cout, :] = pd[:, off:off + L]
    y2 = jnp.dot(w2_ref[...].astype(jnp.float32), p2_ref[...],
                 preferred_element_type=jnp.float32)       # (Cout, L)
    a2 = _instance_norm_relu(y2, mask, count)

    # Channel-major store; wrapper recovers NCHW with reshape + width slice.
    o_ref[0] = a2.astype(o_ref.dtype)


def double_conv(x_nchw, w1_oihw, w2_oihw):
    """DoubleConv forward.  x: (N,Cin,H,W); weights: PyTorch OIHW; returns NCHW."""
    N, Cin, H, W = x_nchw.shape
    Cout = w1_oihw.shape[0]
    Wp = W + 2
    L = H * Wp
    LP = (H + 3) * Wp   # one extra zero row keeps shifted windows of the
                        # (masked) garbage columns in bounds.

    # NCHW -> zero-pad H by (1,2) and W by (1,1), flatten spatial dims.
    # Channel-major flat padded image: no transpose needed on the input side.
    x_pad = jnp.pad(x_nchw, ((0, 0), (0, 0), (1, 2), (1, 1))).reshape(N, Cin, LP)

    # OIHW -> (Cout, ky, kx, Cin) -> (Cout, 9*Cin): column order (ky, kx, cin)
    # matches the kernel's im2col row order.
    w1 = jnp.transpose(w1_oihw, (0, 2, 3, 1)).reshape(Cout, 9 * Cin)
    w2 = jnp.transpose(w2_oihw, (0, 2, 3, 1)).reshape(Cout, 9 * Cout)

    # 1.0 at flat columns that correspond to real output pixels (w < W).
    mask = ((jnp.arange(L, dtype=jnp.int32) % Wp) < W).astype(jnp.float32)
    mask = mask.reshape(1, L)

    kernel = functools.partial(_double_conv_kernel, H=H, W=W, Cin=Cin, Cout=Cout)
    out = pl.pallas_call(
        kernel,
        out_shape=jax.ShapeDtypeStruct((N, Cout, L), x_nchw.dtype),
        grid=(N,),
        in_specs=[
            pl.BlockSpec((1, Cin, LP), lambda n: (n, 0, 0)),
            pl.BlockSpec((Cout, 9 * Cin), lambda n: (0, 0)),
            pl.BlockSpec((Cout, 9 * Cout), lambda n: (0, 0)),
            pl.BlockSpec((1, L), lambda n: (0, 0)),
        ],
        out_specs=pl.BlockSpec((1, Cout, L), lambda n: (n, 0, 0)),
        scratch_shapes=[
            pltpu.VMEM((9 * Cin, L), jnp.float32),    # conv1 im2col buffer
            pltpu.VMEM((Cout, LP), jnp.float32),      # padded conv1 activation
            pltpu.VMEM((9 * Cout, L), jnp.float32),   # conv2 im2col buffer
        ],
        compiler_params=pltpu.CompilerParams(
            dimension_semantics=("parallel",),
            vmem_limit_bytes=64 * 1024 * 1024,
        ),
    )(x_pad, w1, w2, mask)

    # (N, Cout, H*(W+2)) -> drop the two padding columns per image row -> NCHW.
    return out.reshape(N, Cout, H, Wp)[:, :, :, :W]


def _reference_double_conv(x, w1, w2):
    """Pure-JAX reference of Conv2d(3x3,p=1,no bias)+InstanceNorm2d+ReLU, twice."""
    def block(h, w):
        y = jax.lax.conv_general_dilated(
            h, w, window_strides=(1, 1), padding=((1, 1), (1, 1)),
            dimension_numbers=("NCHW", "OIHW", "NCHW"))
        mean = jnp.mean(y, axis=(2, 3), keepdims=True)
        var = jnp.mean(jnp.square(y - mean), axis=(2, 3), keepdims=True)
        return jnp.maximum((y - mean) * jax.lax.rsqrt(var + 1e-5), 0.0)
    return block(block(x, w1), w2)


if __name__ == "__main__":
    N, Cin, Cout, H, W = 2, 4, 8, 16, 16

    key = jax.random.PRNGKey(0)
    kx, kw1, kw2 = jax.random.split(key, 3)

    x = jax.random.normal(kx, (N, Cin, H, W), dtype=jnp.float32)
    # PyTorch Conv2d weight shape: OIHW.
    w1 = jax.random.normal(kw1, (Cout, Cin, 3, 3), dtype=jnp.float32) * 0.1
    w2 = jax.random.normal(kw2, (Cout, Cout, 3, 3), dtype=jnp.float32) * 0.1

    out = jax.jit(double_conv)(x, w1, w2)
    out = jax.block_until_ready(out)

    assert out.shape == (N, Cout, H, W), out.shape
    assert bool(jnp.all(jnp.isfinite(out)))

    # Sanity-check against a pure-JAX/XLA reference (loose tolerance: both
    # sides may use reduced-precision MXU passes for f32 matmuls/convs).
    ref = _reference_double_conv(x, w1, w2)
    max_err = float(jnp.max(jnp.abs(out - ref)))
    assert max_err < 1e-1, max_err

    print("KERNEL_OK")
</pallas_src>

<mosaic_0001>
module attributes {stable_mosaic.version = 11 : i64} {
  func.func @_double_conv_kernel(%arg0: i32, %arg1: memref<1x4x342xf32, #tpu.memory_space<vmem>>, %arg2: memref<8x36xf32, #tpu.memory_space<vmem>>, %arg3: memref<8x72xf32, #tpu.memory_space<vmem>>, %arg4: memref<1x288xf32, #tpu.memory_space<vmem>>, %arg5: memref<1x8x288xf32, #tpu.memory_space<vmem>>, %arg6: memref<36x288xf32, #tpu.memory_space<vmem>>, %arg7: memref<8x342xf32, #tpu.memory_space<vmem>>, %arg8: memref<72x288xf32, #tpu.memory_space<vmem>>) attributes {dimension_semantics = [#tpu.dimension_semantics<parallel>], iteration_bounds = array<i64: 2>, scalar_prefetch = 0 : i64, scratch_operands = 3 : i64, tpu.core_type = #tpu.core_type<tc>, window_params = [{transform_indices = @transform_0, window_bounds = array<i64: 1, 4, 342>}, {pipeline_mode = #tpu.pipeline_mode<synchronous>, transform_indices = @transform_1, window_bounds = array<i64: 8, 36>}, {pipeline_mode = #tpu.pipeline_mode<synchronous>, transform_indices = @transform_2, window_bounds = array<i64: 8, 72>}, {pipeline_mode = #tpu.pipeline_mode<synchronous>, transform_indices = @transform_3, window_bounds = array<i64: 1, 288>}, {transform_indices = @transform_4, window_bounds = array<i64: 1, 8, 288>}]} {
    %c0 = arith.constant 0 : index
    %c0_0 = arith.constant 0 : index
    %0 = vector.load %arg4[%c0, %c0_0] : memref<1x288xf32, #tpu.memory_space<vmem>>, vector<1x288xf32>
    %c0_1 = arith.constant 0 : index
    %c0_2 = arith.constant 0 : index
    %c0_3 = arith.constant 0 : index
    %1 = vector.load %arg1[%c0_1, %c0_2, %c0_3] : memref<1x4x342xf32, #tpu.memory_space<vmem>>, vector<1x4x342xf32>
    %2 = vector.shape_cast %1 : vector<1x4x342xf32> to vector<4x342xf32>
    %3 = vector.extract_strided_slice %2 {offsets = [0, 0], sizes = [4, 288], strides = [1, 1]} : vector<4x342xf32> to vector<4x288xf32>
    %c0_4 = arith.constant 0 : index
    %c0_5 = arith.constant 0 : index
    %4 = vector.load %arg6[%c0_4, %c0_5] : memref<36x288xf32, #tpu.memory_space<vmem>>, vector<4x288xf32>
    tpu.vector_store %arg6[%c0_4, %c0_5], %3 {strides = array<i32>} : memref<36x288xf32, #tpu.memory_space<vmem>>, vector<4x288xf32>,
    %5 = vector.extract_strided_slice %2 {offsets = [0, 1], sizes = [4, 288], strides = [1, 1]} : vector<4x342xf32> to vector<4x288xf32>
    %c4 = arith.constant 4 : index
    %c0_6 = arith.constant 0 : index
    %6 = vector.load %arg6[%c4, %c0_6] : memref<36x288xf32, #tpu.memory_space<vmem>>, vector<4x288xf32>
    tpu.vector_store %arg6[%c4, %c0_6], %5 {strides = array<i32>} : memref<36x288xf32, #tpu.memory_space<vmem>>, vector<4x288xf32>,
    %7 = vector.extract_strided_slice %2 {offsets = [0, 2], sizes = [4, 288], strides = [1, 1]} : vector<4x342xf32> to vector<4x288xf32>
    %c8 = arith.constant 8 : index
    %c0_7 = arith.constant 0 : index
    %8 = vector.load %arg6[%c8, %c0_7] : memref<36x288xf32, #tpu.memory_space<vmem>>, vector<4x288xf32>
    tpu.vector_store %arg6[%c8, %c0_7], %7 {strides = array<i32>} : memref<36x288xf32, #tpu.memory_space<vmem>>, vector<4x288xf32>,
    %9 = vector.extract_strided_slice %2 {offsets = [0, 18], sizes = [4, 288], strides = [1, 1]} : vector<4x342xf32> to vector<4x288xf32>
    %c12 = arith.constant 12 : index
    %c0_8 = arith.constant 0 : index
    %10 = vector.load %arg6[%c12, %c0_8] : memref<36x288xf32, #tpu.memory_space<vmem>>, vector<4x288xf32>
    tpu.vector_store %arg6[%c12, %c0_8], %9 {strides = array<i32>} : memref<36x288xf32, #tpu.memory_space<vmem>>, vector<4x288xf32>,
    %11 = vector.extract_strided_slice %2 {offsets = [0, 19], sizes = [4, 288], strides = [1, 1]} : vector<4x342xf32> to vector<4x288xf32>
    %c16 = arith.constant 16 : index
    %c0_9 = arith.constant 0 : index
    %12 = vector.load %arg6[%c16, %c0_9] : memref<36x288xf32, #tpu.memory_space<vmem>>, vector<4x288xf32>
    tpu.vector_store %arg6[%c16, %c0_9], %11 {strides = array<i32>} : memref<36x288xf32, #tpu.memory_space<vmem>>, vector<4x288xf32>,
    %13 = vector.extract_strided_slice %2 {offsets = [0, 20], sizes = [4, 288], strides = [1, 1]} : vector<4x342xf32> to vector<4x288xf32>
    %c20 = arith.constant 20 : index
    %c0_10 = arith.constant 0 : index
    %14 = vector.load %arg6[%c20, %c0_10] : memref<36x288xf32, #tpu.memory_space<vmem>>, vector<4x288xf32>
    tpu.vector_store %arg6[%c20, %c0_10], %13 {strides = array<i32>} : memref<36x288xf32, #tpu.memory_space<vmem>>, vector<4x288xf32>,
    %15 = vector.extract_strided_slice %2 {offsets = [0, 36], sizes = [4, 288], strides = [1, 1]} : vector<4x342xf32> to vector<4x288xf32>
    %c24 = arith.constant 24 : index
    %c0_11 = arith.constant 0 : index
    %16 = vector.load %arg6[%c24, %c0_11] : memref<36x288xf32, #tpu.memory_space<vmem>>, vector<4x288xf32>
    tpu.vector_store %arg6[%c24, %c0_11], %15 {strides = array<i32>} : memref<36x288xf32, #tpu.memory_space<vmem>>, vector<4x288xf32>,
    %17 = vector.extract_strided_slice %2 {offsets = [0, 37], sizes = [4, 288], strides = [1, 1]} : vector<4x342xf32> to vector<4x288xf32>
    %c28 = arith.constant 28 : index
    %c0_12 = arith.constant 0 : index
    %18 = vector.load %arg6[%c28, %c0_12] : memref<36x288xf32, #tpu.memory_space<vmem>>, vector<4x288xf32>
    tpu.vector_store %arg6[%c28, %c0_12], %17 {strides = array<i32>} : memref<36x288xf32, #tpu.memory_space<vmem>>, vector<4x288xf32>,
    %19 = vector.extract_strided_slice %2 {offsets = [0, 38], sizes = [4, 288], strides = [1, 1]} : vector<4x342xf32> to vector<4x288xf32>
    %c32 = arith.constant 32 : index
    %c0_13 = arith.constant 0 : index
    %20 = vector.load %arg6[%c32, %c0_13] : memref<36x288xf32, #tpu.memory_space<vmem>>, vector<4x288xf32>
    tpu.vector_store %arg6[%c32, %c0_13], %19 {strides = array<i32>} : memref<36x288xf32, #tpu.memory_space<vmem>>, vector<4x288xf32>,
    %c0_14 = arith.constant 0 : index
    %c0_15 = arith.constant 0 : index
    %21 = vector.load %arg2[%c0_14, %c0_15] : memref<8x36xf32, #tpu.memory_space<vmem>>, vector<8x36xf32>
    %c0_16 = arith.constant 0 : index
    %c0_17 = arith.constant 0 : index
    %22 = vector.load %arg6[%c0_16, %c0_17] : memref<36x288xf32, #tpu.memory_space<vmem>>, vector<36x288xf32>
    %cst = arith.constant dense<0.000000e+00> : vector<8x288xf32>
    %23 = tpu.matmul %21, %22, %cst {dimension_numbers = #tpu.dot_dimension_numbers<[1], [0], [0], [1], [0, 0, 1, 1], [], []>} : vector<8x36xf32>, vector<36x288xf32>, vector<8x288xf32> -> vector<8x288xf32>
    %24 = vector.broadcast %0 : vector<1x288xf32> to vector<8x288xf32>
    %25 = arith.mulf %23, %24 : vector<8x288xf32>
    %cst_18 = arith.constant dense<0.000000e+00> : vector<8xf32>
    %26 = vector.multi_reduction <add>, %25, %cst_18 [1] : vector<8x288xf32> to vector<8xf32>
    %27 = vector.shape_cast %26 : vector<8xf32> to vector<8x1xf32>
    %cst_19 = arith.constant 3.906250e-03 : f32
    %28 = vector.broadcast %cst_19 : f32 to vector<8x1xf32>
    %29 = arith.mulf %27, %28 : vector<8x1xf32>
    %30 = vector.broadcast %29 : vector<8x1xf32> to vector<8x288xf32>
    %31 = arith.subf %23, %30 : vector<8x288xf32>
    %32 = vector.broadcast %0 : vector<1x288xf32> to vector<8x288xf32>
    %33 = arith.mulf %31, %32 : vector<8x288xf32>
    %34 = arith.mulf %33, %33 : vector<8x288xf32>
    %cst_20 = arith.constant dense<0.000000e+00> : vector<8xf32>
    %35 = vector.multi_reduction <add>, %34, %cst_20 [1] : vector<8x288xf32> to vector<8xf32>
    %36 = vector.shape_cast %35 : vector<8xf32> to vector<8x1xf32>
    %cst_21 = arith.constant 3.906250e-03 : f32
    %37 = vector.broadcast %cst_21 : f32 to vector<8x1xf32>
    %38 = arith.mulf %36, %37 : vector<8x1xf32>
    %cst_22 = arith.constant 9.99999974E-6 : f32
    %39 = vector.broadcast %cst_22 : f32 to vector<8x1xf32>
    %40 = arith.addf %38, %39 : vector<8x1xf32>
    %41 = math.rsqrt %40 : vector<8x1xf32>
    %42 = vector.broadcast %41 : vector<8x1xf32> to vector<8x288xf32>
    %43 = arith.mulf %33, %42 : vector<8x288xf32>
    %cst_23 = arith.constant 0.000000e+00 : f32
    %44 = vector.broadcast %cst_23 : f32 to vector<8x288xf32>
    %45 = arith.maximumf %43, %44 : vector<8x288xf32>
    %cst_24 = arith.constant 0.000000e+00 : f32
    %46 = vector.broadcast %cst_24 : f32 to vector<8x342xf32>
    %c0_25 = arith.constant 0 : index
    %c0_26 = arith.constant 0 : index
    %47 = vector.load %arg7[%c0_25, %c0_26] : memref<8x342xf32, #tpu.memory_space<vmem>>, vector<8x342xf32>
    tpu.vector_store %arg7[%c0_25, %c0_26], %46 {strides = array<i32>} : memref<8x342xf32, #tpu.memory_space<vmem>>, vector<8x342xf32>,
    %c0_27 = arith.constant 0 : index
    %c19 = arith.constant 19 : index
    %48 = vector.load %arg7[%c0_27, %c19] : memref<8x342xf32, #tpu.memory_space<vmem>>, vector<8x288xf32>
    tpu.vector_store %arg7[%c0_27, %c19], %45 {strides = array<i32>} : memref<8x342xf32, #tpu.memory_space<vmem>>, vector<8x288xf32>,
    %c0_28 = arith.constant 0 : index
    %c0_29 = arith.constant 0 : index
    %49 = vector.load %arg7[%c0_28, %c0_29] : memref<8x342xf32, #tpu.memory_space<vmem>>, vector<8x342xf32>
    %50 = vector.extract_strided_slice %49 {offsets = [0, 0], sizes = [8, 288], strides = [1, 1]} : vector<8x342xf32> to vector<8x288xf32>
    %c0_30 = arith.constant 0 : index
    %c0_31 = arith.constant 0 : index
    %51 = vector.load %arg8[%c0_30, %c0_31] : memref<72x288xf32, #tpu.memory_space<vmem>>, vector<8x288xf32>
    tpu.vector_store %arg8[%c0_30, %c0_31], %50 {strides = array<i32>} : memref<72x288xf32, #tpu.memory_space<vmem>>, vector<8x288xf32>,
    %52 = vector.extract_strided_slice %49 {offsets = [0, 1], sizes = [8, 288], strides = [1, 1]} : vector<8x342xf32> to vector<8x288xf32>
    %c8_32 = arith.constant 8 : index
    %c0_33 = arith.constant 0 : index
    %53 = vector.load %arg8[%c8_32, %c0_33] : memref<72x288xf32, #tpu.memory_space<vmem>>, vector<8x288xf32>
    tpu.vector_store %arg8[%c8_32, %c0_33], %52 {strides = array<i32>} : memref<72x288xf32, #tpu.memory_space<vmem>>, vector<8x288xf32>,
    %54 = vector.extract_strided_slice %49 {offsets = [0, 2], sizes = [8, 288], strides = [1, 1]} : vector<8x342xf32> to vector<8x288xf32>
    %c16_34 = arith.constant 16 : index
    %c0_35 = arith.constant 0 : index
    %55 = vector.load %arg8[%c16_34, %c0_35] : memref<72x288xf32, #tpu.memory_space<vmem>>, vector<8x288xf32>
    tpu.vector_store %arg8[%c16_34, %c0_35], %54 {strides = array<i32>} : memref<72x288xf32, #tpu.memory_space<vmem>>, vector<8x288xf32>,
    %56 = vector.extract_strided_slice %49 {offsets = [0, 18], sizes = [8, 288], strides = [1, 1]} : vector<8x342xf32> to vector<8x288xf32>
    %c24_36 = arith.constant 24 : index
    %c0_37 = arith.constant 0 : index
    %57 = vector.load %arg8[%c24_36, %c0_37] : memref<72x288xf32, #tpu.memory_space<vmem>>, vector<8x288xf32>
    tpu.vector_store %arg8[%c24_36, %c0_37], %56 {strides = array<i32>} : memref<72x288xf32, #tpu.memory_space<vmem>>, vector<8x288xf32>,
    %58 = vector.extract_strided_slice %49 {offsets = [0, 19], sizes = [8, 288], strides = [1, 1]} : vector<8x342xf32> to vector<8x288xf32>
    %c32_38 = arith.constant 32 : index
    %c0_39 = arith.constant 0 : index
    %59 = vector.load %arg8[%c32_38, %c0_39] : memref<72x288xf32, #tpu.memory_space<vmem>>, vector<8x288xf32>
    tpu.vector_store %arg8[%c32_38, %c0_39], %58 {strides = array<i32>} : memref<72x288xf32, #tpu.memory_space<vmem>>, vector<8x288xf32>,
    %60 = vector.extract_strided_slice %49 {offsets = [0, 20], sizes = [8, 288], strides = [1, 1]} : vector<8x342xf32> to vector<8x288xf32>
    %c40 = arith.constant 40 : index
    %c0_40 = arith.constant 0 : index
    %61 = vector.load %arg8[%c40, %c0_40] : memref<72x288xf32, #tpu.memory_space<vmem>>, vector<8x288xf32>
    tpu.vector_store %arg8[%c40, %c0_40], %60 {strides = array<i32>} : memref<72x288xf32, #tpu.memory_space<vmem>>, vector<8x288xf32>,
    %62 = vector.extract_strided_slice %49 {offsets = [0, 36], sizes = [8, 288], strides = [1, 1]} : vector<8x342xf32> to vector<8x288xf32>
    %c48 = arith.constant 48 : index
    %c0_41 = arith.constant 0 : index
    %63 = vector.load %arg8[%c48, %c0_41] : memref<72x288xf32, #tpu.memory_space<vmem>>, vector<8x288xf32>
    tpu.vector_store %arg8[%c48, %c0_41], %62 {strides = array<i32>} : memref<72x288xf32, #tpu.memory_space<vmem>>, vector<8x288xf32>,
    %64 = vector.extract_strided_slice %49 {offsets = [0, 37], sizes = [8, 288], strides = [1, 1]} : vector<8x342xf32> to vector<8x288xf32>
    %c56 = arith.constant 56 : index
    %c0_42 = arith.constant 0 : index
    %65 = vector.load %arg8[%c56, %c0_42] : memref<72x288xf32, #tpu.memory_space<vmem>>, vector<8x288xf32>
    tpu.vector_store %arg8[%c56, %c0_42], %64 {strides = array<i32>} : memref<72x288xf32, #tpu.memory_space<vmem>>, vector<8x288xf32>,
    %66 = vector.extract_strided_slice %49 {offsets = [0, 38], sizes = [8, 288], strides = [1, 1]} : vector<8x342xf32> to vector<8x288xf32>
    %c64 = arith.constant 64 : index
    %c0_43 = arith.constant 0 : index
    %67 = vector.load %arg8[%c64, %c0_43] : memref<72x288xf32, #tpu.memory_space<vmem>>, vector<8x288xf32>
    tpu.vector_store %arg8[%c64, %c0_43], %66 {strides = array<i32>} : memref<72x288xf32, #tpu.memory_space<vmem>>, vector<8x288xf32>,
    %c0_44 = arith.constant 0 : index
    %c0_45 = arith.constant 0 : index
    %68 = vector.load %arg3[%c0_44, %c0_45] : memref<8x72xf32, #tpu.memory_space<vmem>>, vector<8x72xf32>
    %c0_46 = arith.constant 0 : index
    %c0_47 = arith.constant 0 : index
    %69 = vector.load %arg8[%c0_46, %c0_47] : memref<72x288xf32, #tpu.memory_space<vmem>>, vector<72x288xf32>
    %cst_48 = arith.constant dense<0.000000e+00> : vector<8x288xf32>
    %70 = tpu.matmul %68, %69, %cst_48 {dimension_numbers = #tpu.dot_dimension_numbers<[1], [0], [0], [1], [0, 0, 1, 1], [], []>} : vector<8x72xf32>, vector<72x288xf32>, vector<8x288xf32> -> vector<8x288xf32>
    %71 = vector.broadcast %0 : vector<1x288xf32> to vector<8x288xf32>
    %72 = arith.mulf %70, %71 : vector<8x288xf32>
    %cst_49 = arith.constant dense<0.000000e+00> : vector<8xf32>
    %73 = vector.multi_reduction <add>, %72, %cst_49 [1] : vector<8x288xf32> to vector<8xf32>
    %74 = vector.shape_cast %73 : vector<8xf32> to vector<8x1xf32>
    %cst_50 = arith.constant 3.906250e-03 : f32
    %75 = vector.broadcast %cst_50 : f32 to vector<8x1xf32>
    %76 = arith.mulf %74, %75 : vector<8x1xf32>
    %77 = vector.broadcast %76 : vector<8x1xf32> to vector<8x288xf32>
    %78 = arith.subf %70, %77 : vector<8x288xf32>
    %79 = vector.broadcast %0 : vector<1x288xf32> to vector<8x288xf32>
    %80 = arith.mulf %78, %79 : vector<8x288xf32>
    %81 = arith.mulf %80, %80 : vector<8x288xf32>
    %cst_51 = arith.constant dense<0.000000e+00> : vector<8xf32>
    %82 = vector.multi_reduction <add>, %81, %cst_51 [1] : vector<8x288xf32> to vector<8xf32>
    %83 = vector.shape_cast %82 : vector<8xf32> to vector<8x1xf32>
    %cst_52 = arith.constant 3.906250e-03 : f32
    %84 = vector.broadcast %cst_52 : f32 to vector<8x1xf32>
    %85 = arith.mulf %83, %84 : vector<8x1xf32>
    %cst_53 = arith.constant 9.99999974E-6 : f32
    %86 = vector.broadcast %cst_53 : f32 to vector<8x1xf32>
    %87 = arith.addf %85, %86 : vector<8x1xf32>
    %88 = math.rsqrt %87 : vector<8x1xf32>
    %89 = vector.broadcast %88 : vector<8x1xf32> to vector<8x288xf32>
    %90 = arith.mulf %80, %89 : vector<8x288xf32>
    %cst_54 = arith.constant 0.000000e+00 : f32
    %91 = vector.broadcast %cst_54 : f32 to vector<8x288xf32>
    %92 = arith.maximumf %90, %91 : vector<8x288xf32>
    %c0_55 = arith.constant 0 : index
    %c0_56 = arith.constant 0 : index
    %c0_57 = arith.constant 0 : index
    %93 = vector.load %arg5[%c0_55, %c0_56, %c0_57] : memref<1x8x288xf32, #tpu.memory_space<vmem>>, vector<1x8x288xf32>
    %94 = vector.shape_cast %93 : vector<1x8x288xf32> to vector<8x288xf32>
    %95 = vector.shape_cast %92 : vector<8x288xf32> to vector<1x8x288xf32>
    tpu.vector_store %arg5[%c0_55, %c0_56, %c0_57], %95 {strides = array<i32>} : memref<1x8x288xf32, #tpu.memory_space<vmem>>, vector<1x8x288xf32>,
    return
  }
  func.func @transform_0(%arg0: i32) -> (i32, i32, i32) {
    %c0_i32 = arith.constant 0 : i32
    %c0_i32_0 = arith.constant 0 : i32
    %c0_i32_1 = arith.constant 0 : i32
    return %arg0, %c0_i32, %c0_i32_0 : i32, i32, i32
  }
  func.func @transform_1(%arg0: i32) -> (i32, i32) {
    %c0_i32 = arith.constant 0 : i32
    %c0_i32_0 = arith.constant 0 : i32
    %c0_i32_1 = arith.constant 0 : i32
    return %c0_i32, %c0_i32_0 : i32, i32
  }
  func.func @transform_2(%arg0: i32) -> (i32, i32) {
    %c0_i32 = arith.constant 0 : i32
    %c0_i32_0 = arith.constant 0 : i32
    %c0_i32_1 = arith.constant 0 : i32
    return %c0_i32, %c0_i32_0 : i32, i32
  }
  func.func @transform_3(%arg0: i32) -> (i32, i32) {
    %c0_i32 = arith.constant 0 : i32
    %c0_i32_0 = arith.constant 0 : i32
    %c0_i32_1 = arith.constant 0 : i32
    return %c0_i32, %c0_i32_0 : i32, i32
  }
  func.func @transform_4(%arg0: i32) -> (i32, i32, i32) {
    %c0_i32 = arith.constant 0 : i32
    %c0_i32_0 = arith.constant 0 : i32
    %c0_i32_1 = arith.constant 0 : i32
    return %arg0, %c0_i32, %c0_i32_0 : i32, i32, i32
  }
}

</mosaic_0001>

<llo_original>
// kernel: double_conv.1
$region0: #{double_conv.1}
  #allocation0 [shape = 'u32[]', space=smem, size = 0x4, offset = 0x4, fixed_abs, tag = 'smem constant byte address 0x4 - core index']
  #allocation1 [shape = 'u32[144,128]{1,0:T(1,128)}', space=vmem, size = 0x12000, scoped, tag = 'internal scratch']
  #allocation2 [shape = 'f32[36,288]{1,0:T(8,128)}', space=vmem, size = 0xf000, scoped, tag = 'scratch operand']
  #allocation3 [shape = 'f32[8,342]{1,0:T(8,128)}', space=vmem, size = 0x3000, scoped, tag = 'scratch operand']
  #allocation4 [shape = 'f32[72,288]{1,0:T(8,128)}', space=vmem, size = 0x1b000, scoped, tag = 'scratch operand']
  %s0 = inlined_call_operand.vmem [shape: f32[2,4,342], index: 0, kind: input, shape index: {}]
  %s1 = inlined_call_operand.vmem [shape: f32[8,36], index: 1, kind: input, shape index: {}]
  %s2 = inlined_call_operand.vmem [shape: f32[8,72], index: 2, kind: input, shape index: {}]
  %s3 = inlined_call_operand.vmem [shape: f32[1,288], index: 3, kind: input, shape index: {}]
  %s4 = inlined_call_operand.vmem [shape: f32[2,8,288], index: 4, kind: output, shape index: {}]
  %s5 = sld [smem:[#allocation0]]
  $region49: #{double_conv.1} parent=0
    _
  %s7 = ssub.s32 1, %s5
  %s8 = scalar_select 0, %s7, %s5
  loop: start=0, step=1, limit=4
  $region2: #{double_conv.1} parent=0 // loop_pre_header
    _
  $region3: #{double_conv.1} parent=0 // loop_header
    %s10 = sphi 0, %s14
    %p11 = scmp.ge.s32.totalorder %s10, 4
    %s20 = sphi 0, %s22
    %s23 = sphi 0, %s20
    %s24 = sphi 0, %s23
    %s40 = sphi 0, %s24
    %s44 = sphi 0, %s44
    %s46 = sphi 0, %s44
    %s47 = sphi 0, %s46
    %s61 = sphi 0, %s47
    %s65 = sphi 0, %s65
    %s67 = sphi 0, %s65
    %s68 = sphi 0, %s67
    %s82 = sphi 0, %s68
    %s86 = sphi 0, %s86
    %s88 = sphi 0, %s86
    %s89 = sphi 0, %s88
    %s103 = sphi 0, %s89
    %s109 = sphi 0, %s111
    %s112 = sphi 0, %s109
    %s113 = sphi 0, %s112
    %s129 = sphi 0, %s113
  $region4: #{double_conv.1} parent=0 // loop_header_branch
    %13 = sbr.rel (%p11) target = $region8
  $region5: #{double_conv.1} parent=0 // loop_body
    %s15 = ssub.s32 %s10, 1
    %s16 = ssub.s32 %s10, 2
    %s17 = sadd.s32 %s10, 1
    %s18 = ssub.s32 %s10, %s17
    %p19 = scmp.eq.s32.totalorder %s18, 0
    %s21 = sadd.s32 %s20, 1
    %s22 = scalar_select %p19, %s20, %s21
    %p25 = pneg %p19
    %p26 = scmp.eq.s32.totalorder %s10, 1
    %p27 = por %p25, %p26
    %p28 = scmp.ne.s32.totalorder %s20, %s23
    %p29 = scmp.eq.s32.totalorder %s10, 0
    %p30 = por %p28, %p29
    %p31 = scmp.ne.s32.totalorder %s20, %s23
    %p32 = scmp.eq.s32.totalorder %s15, 1
    %p33 = por %p31, %p32
    %p34 = scmp.ne.s32.totalorder %s23, %s24
    %p35 = scmp.eq.s32.totalorder %s15, 0
    %p36 = por %p34, %p35
    %p37 = scmp.ne.s32.totalorder %s23, %s24
    %p38 = scmp.eq.s32.totalorder %s16, 1
    %p39 = por %p37, %p38
    %p41 = scmp.ne.s32.totalorder %s24, %s40
    %p42 = scmp.eq.s32.totalorder %s16, 0
    %p43 = por %p41, %p42
    %s45 = sadd.s32 %s44, 1
    %p48 = scmp.eq.s32.totalorder %s10, 1
    %p49 = scmp.ne.s32.totalorder %s44, %s46
    %p50 = scmp.eq.s32.totalorder %s10, 0
    %p51 = por %p49, %p50
    %p52 = scmp.ne.s32.totalorder %s44, %s46
    %p53 = scmp.eq.s32.totalorder %s15, 1
    %p54 = por %p52, %p53
    %p55 = scmp.ne.s32.totalorder %s46, %s47
    %p56 = scmp.eq.s32.totalorder %s15, 0
    %p57 = por %p55, %p56
    %p58 = scmp.ne.s32.totalorder %s46, %s47
    %p59 = scmp.eq.s32.totalorder %s16, 1
    %p60 = por %p58, %p59
    %p62 = scmp.ne.s32.totalorder %s47, %s61
    %p63 = scmp.eq.s32.totalorder %s16, 0
    %p64 = por %p62, %p63
    %s66 = sadd.s32 %s65, 1
    %p69 = scmp.eq.s32.totalorder %s10, 1
    %p70 = scmp.ne.s32.totalorder %s65, %s67
    %p71 = scmp.eq.s32.totalorder %s10, 0
    %p72 = por %p70, %p71
    %p73 = scmp.ne.s32.totalorder %s65, %s67
    %p74 = scmp.eq.s32.totalorder %s15, 1
    %p75 = por %p73, %p74
    %p76 = scmp.ne.s32.totalorder %s67, %s68
    %p77 = scmp.eq.s32.totalorder %s15, 0
    %p78 = por %p76, %p77
    %p79 = scmp.ne.s32.totalorder %s67, %s68
    %p80 = scmp.eq.s32.totalorder %s16, 1
    %p81 = por %p79, %p80
    %p83 = scmp.ne.s32.totalorder %s68, %s82
    %p84 = scmp.eq.s32.totalorder %s16, 0
    %p85 = por %p83, %p84
    %s87 = sadd.s32 %s86, 1
    %p90 = scmp.eq.s32.totalorder %s10, 1
    %p91 = scmp.ne.s32.totalorder %s86, %s88
    %p92 = scmp.eq.s32.totalorder %s10, 0
    %p93 = por %p91, %p92
    %p94 = scmp.ne.s32.totalorder %s86, %s88
    %p95 = scmp.eq.s32.totalorder %s15, 1
    %p96 = por %p94, %p95
    %p97 = scmp.ne.s32.totalorder %s88, %s89
    %p98 = scmp.eq.s32.totalorder %s15, 0
    %p99 = por %p97, %p98
    %p100 = scmp.ne.s32.totalorder %s88, %s89
    %p101 = scmp.eq.s32.totalorder %s16, 1
    %p102 = por %p100, %p101
    %p104 = scmp.ne.s32.totalorder %s89, %s103
    %p105 = scmp.eq.s32.totalorder %s16, 0
    %p106 = por %p104, %p105
    %s107 = ssub.s32 %s10, %s17
    %p108 = scmp.eq.s32.totalorder %s107, 0
    %s110 = sadd.s32 %s109, 1
    %s111 = scalar_select %p108, %s109, %s110
    %p114 = pneg %p108
    %p115 = scmp.eq.s32.totalorder %s10, 1
    %p116 = por %p114, %p115
    %p117 = scmp.ne.s32.totalorder %s109, %s112
    %p118 = scmp.eq.s32.totalorder %s10, 0
    %p119 = por %p117, %p118
    %p120 = scmp.ne.s32.totalorder %s109, %s112
    %p121 = scmp.eq.s32.totalorder %s15, 1
    %p122 = por %p120, %p121
    %p123 = scmp.ne.s32.totalorder %s112, %s113
    %p124 = scmp.eq.s32.totalorder %s15, 0
    %p125 = por %p123, %p124
    %p126 = scmp.ne.s32.totalorder %s112, %s113
    %p127 = scmp.eq.s32.totalorder %s16, 1
    %p128 = por %p126, %p127
    %p130 = scmp.ne.s32.totalorder %s113, %s129
    %p131 = scmp.eq.s32.totalorder %s16, 0
    %p132 = por %p130, %p131
    %p133 = scmp.le.s32.totalorder 1, %s10
    %p134 = scmp.lt.s32.totalorder %s10, 3
    %p135 = pnand %p133, %p134
    %p136 = pneg %p135
    // Predicated region
    $region9: #{double_conv.1} parent=5 // pred_check
      _
    $region10: #{double_conv.1} parent=5 // pred_check_branch
      %138 = sbr.rel (%p135) target = $region12
    $region11: #{double_conv.1} parent=5 // pred_region
      %s139 = ssub.s32 %s10, 1
      // Predicated region
      $region13: #{double_conv.1} parent=11 // pred_check
        %p140 = pneg %p57
      $region14: #{double_conv.1} parent=11 // pred_check_branch
        %142 = sbr.rel (%p140) target = $region16
      $region15: #{double_conv.1} parent=11 // pred_region
        _
      $region16: #{double_conv.1} parent=11 // pred_fallthru
        _
      // Predicated region
      $region17: #{double_conv.1} parent=11 // pred_check
        %p143 = pneg %p78
      $region18: #{double_conv.1} parent=11 // pred_check_branch
        %145 = sbr.rel (%p143) target = $region20
      $region19: #{double_conv.1} parent=11 // pred_region
        _
      $region20: #{double_conv.1} parent=11 // pred_fallthru
        _
      // Predicated region
      $region21: #{double_conv.1} parent=11 // pred_check
        %p146 = pneg %p99
      $region22: #{double_conv.1} parent=11 // pred_check_branch
        %148 = sbr.rel (%p146) target = $region24
      $region23: #{double_conv.1} parent=11 // pred_region
        _
      $region24: #{double_conv.1} parent=11 // pred_fallthru
        _
    $region12: #{double_conv.1} parent=5 // pred_fallthru
      _
    %p149 = scmp.lt.s32.totalorder %s10, 2
    // Predicated region
    $region25: #{double_conv.1} parent=5 // pred_check
      %p150 = pneg %p149
    $region26: #{double_conv.1} parent=5 // pred_check_branch
      %152 = sbr.rel (%p150) target = $region28
    $region27: #{double_conv.1} parent=5 // pred_region
      // Predicated region
      $region29: #{double_conv.1} parent=27 // pred_check
        %p153 = pneg %p30
      $region30: #{double_conv.1} parent=27 // pred_check_branch
        %155 = sbr.rel (%p153) target = $region32
      $region31: #{double_conv.1} parent=27 // pred_region
        %p156 = scmp.lt.s32.totalorder %s10, 1
        %s157 = scalar_select %p156, %s10, 1
        %s158 = smul.addr %s157, 3
        %s159 = smul.addr %s158, 4
        %s160 = scalar_lea.vmem %s0, %s159
      $region32: #{double_conv.1} parent=27 // pred_fallthru
        _
    $region28: #{double_conv.1} parent=5 // pred_fallthru
      _
    %p161 = scmp.le.s32.totalorder 1, %s10
    %p162 = scmp.lt.s32.totalorder %s10, 3
    %p163 = pnand %p161, %p162
    %p164 = pneg %p163
    // Predicated region
    $region33: #{double_conv.1} parent=5 // pred_check
      _
    $region34: #{double_conv.1} parent=5 // pred_check_branch
      %166 = sbr.rel (%p163) target = $region36
    $region35: #{double_conv.1} parent=5 // pred_region
      %s167 = ssub.s32 %s10, 1
      %p168 = scmp.lt.s32.totalorder %s15, 1
      %s169 = scalar_select %p168, %s15, 1
      %s170 = smul.addr %s169, 3
      %s171 = smul.addr %s170, 4
      %s172 = scalar_lea.vmem %s0, %s171
      %p173 = pneg %p36
      %p174 = pneg %p33
      %p175 = pneg %p57
      %p176 = pneg %p54
      %p177 = pneg %p78
      %p178 = pneg %p75
      %p179 = pneg %p99
      %p180 = pneg %p96
      %p181 = pneg %p125
      %p182 = pneg %p122
      %p183 = scmp.lt.s32.totalorder %s15, 1
      %s184 = scalar_select %p183, %s15, 1
      %s185 = smul.addr %s184, 3
      %s186 = smul.addr %s185, 8
      %s187 = scalar_lea.vmem %s4, %s186
      %p188 = scmp.lt.s32.totalorder %s15, 1
      %s189 = scalar_select %p188, %s15, 1
      %s190 = smul.addr %s189, 3
      %s191 = smul.addr %s190, 4
      %s192 = scalar_lea.vmem %s0, %s191
      %p193 = scmp.lt.s32.totalorder %s15, 1
      %s194 = scalar_select %p193, %s15, 1
      %s195 = smul.addr %s194, 3
      %s196 = smul.addr %s195, 8
      %s197 = scalar_lea.vmem %s4, %s196
      %v198 = vld [vmem:[%s3] sm:$0x7]
      %v199 = vld [vmem:[%s192] sm:$0xff]
      %v200 = vld [vmem:[%s192 + $0x8] sm:$0xf]
      %v203 = vcombine.high %v199, %v199
      %205 = vst [vmem:[#allocation2] sm:$0xf] %v199
      %206 = vst [vmem:[#allocation2 + $0x8] sm:$0xf] %v203
      %vm207 = vcmask 257024
      %208 = vst.msk [vmem:[#allocation2 + $0x10] sm:$0xf] %vm207, %v200
      %v209 = vcombine.low %v199, %v199
      %v210 = vcombine.low %v200, %v200
      %211 = vrot.lane.b32.xlu0 %v209, 127
      %v212 = vpop.permute.xlu0 %211
      %213 = vrot.lane.b32.xlu0 %v199, 127
      %v214 = vpop.permute.xlu0 %213
      %215 = vrot.lane.b32.xlu0 %v210, 127
      %v216 = vpop.permute.xlu0 %215
      %vm217 = vcmask 1039360
      %v218 = vsel %vm217, %v212, %v214
      %v219 = vsel %vm217, %v214, %v216
      %223 = vst [vmem:[#allocation2] sm:$0xf0] %v218
      %224 = vst [vmem:[#allocation2 + $0x8] sm:$0xf0] %v219
      %vm225 = vcmask 261124
      %226 = vst.msk [vmem:[#allocation2 + $0x10] sm:$0xf0] %vm225, %v216
      %227 = vrot.lane.b32.xlu0 %v199, 126
      %v228 = vpop.permute.xlu0 %227
      %229 = vrot.lane.b32.xlu0 %v203, 126
      %v230 = vpop.permute.xlu0 %229
      %231 = vrot.lane.b32.xlu0 %v200, 126
      %v232 = vpop.permute.xlu0 %231
      %vm233 = vcmask 1031168
      %v234 = vsel %vm233, %v228, %v230
      %v235 = vsel %vm233, %v230, %v232
      %239 = vst [vmem:[#allocation2 + $0x18] sm:$0xf] %v234
      %240 = vst [vmem:[#allocation2 + $0x20] sm:$0xf] %v235
      %241 = vst.msk [vmem:[#allocation2 + $0x28] sm:$0xf] %vm207, %v232
      %242 = vrot.lane.b32.xlu0 %v209, 110
      %v243 = vpop.permute.xlu0 %242
      %244 = vrot.lane.b32.xlu0 %v199, 110
      %v245 = vpop.permute.xlu0 %244
      %246 = vrot.lane.b32.xlu0 %v210, 110
      %v247 = vpop.permute.xlu0 %246
      %vm248 = vcmask 900096
      %v249 = vsel %vm248, %v243, %v245
      %v250 = vsel %vm248, %v245, %v247
      %254 = vst [vmem:[#allocation2 + $0x18] sm:$0xf0] %v249
      %255 = vst [vmem:[#allocation2 + $0x20] sm:$0xf0] %v250
      %256 = vst.msk [vmem:[#allocation2 + $0x28] sm:$0xf0] %vm225, %v247
      %257 = vrot.lane.b32.xlu0 %v199, 109
      %v258 = vpop.permute.xlu0 %257
      %259 = vrot.lane.b32.xlu0 %v203, 109
      %v260 = vpop.permute.xlu0 %259
      %261 = vrot.lane.b32.xlu0 %v200, 109
      %v262 = vpop.permute.xlu0 %261
      %vm263 = vcmask 891904
      %v264 = vsel %vm263, %v258, %v260
      %v265 = vsel %vm263, %v260, %v262
      %269 = vst [vmem:[#allocation2 + $0x30] sm:$0xf] %v264
      %270 = vst [vmem:[#allocation2 + $0x38] sm:$0xf] %v265
      %271 = vst.msk [vmem:[#allocation2 + $0x40] sm:$0xf] %vm207, %v262
      %272 = vrot.lane.b32.xlu0 %v209, 108
      %v273 = vpop.permute.xlu0 %272
      %274 = vrot.lane.b32.xlu0 %v199, 108
      %v275 = vpop.permute.xlu0 %274
      %276 = vrot.lane.b32.xlu0 %v210, 108
      %v277 = vpop.permute.xlu0 %276
      %vm278 = vcmask 883712
      %v279 = vsel %vm278, %v273, %v275
      %v280 = vsel %vm278, %v275, %v277
      %284 = vst [vmem:[#allocation2 + $0x30] sm:$0xf0] %v279
      %285 = vst [vmem:[#allocation2 + $0x38] sm:$0xf0] %v280
      %286 = vst.msk [vmem:[#allocation2 + $0x40] sm:$0xf0] %vm225, %v277
      %287 = vrot.lane.b32.xlu0 %v199, 92
      %v288 = vpop.permute.xlu0 %287
      %289 = vrot.lane.b32.xlu0 %v203, 92
      %v290 = vpop.permute.xlu0 %289
      %291 = vrot.lane.b32.xlu0 %v200, 92
      %v292 = vpop.permute.xlu0 %291
      %vm293 = vcmask 752640
      %v294 = vsel %vm293, %v288, %v290
      %v295 = vsel %vm293, %v290, %v292
      %299 = vst [vmem:[#allocation2 + $0x48] sm:$0xf] %v294
      %300 = vst [vmem:[#allocation2 + $0x50] sm:$0xf] %v295
      %301 = vst.msk [vmem:[#allocation2 + $0x58] sm:$0xf] %vm207, %v292
      %302 = vrot.lane.b32.xlu0 %v209, 91
      %v303 = vpop.permute.xlu0 %302
      %304 = vrot.lane.b32.xlu0 %v199, 91
      %v305 = vpop.permute.xlu0 %304
      %306 = vrot.lane.b32.xlu0 %v210, 91
      %v307 = vpop.permute.xlu0 %306
      %vm308 = vcmask 744448
      %v309 = vsel %vm308, %v303, %v305
      %v310 = vsel %vm308, %v305, %v307
      %314 = vst [vmem:[#allocation2 + $0x48] sm:$0xf0] %v309
      %315 = vst [vmem:[#allocation2 + $0x50] sm:$0xf0] %v310
      %316 = vst.msk [vmem:[#allocation2 + $0x58] sm:$0xf0] %vm225, %v307
      %317 = vrot.lane.b32.xlu0 %v199, 90
      %v318 = vpop.permute.xlu0 %317
      %319 = vrot.lane.b32.xlu0 %v203, 90
      %v320 = vpop.permute.xlu0 %319
      %321 = vrot.lane.b32.xlu0 %v200, 90
      %v322 = vpop.permute.xlu0 %321
      %vm323 = vcmask 736256
      %v324 = vsel %vm323, %v318, %v320
      %v325 = vsel %vm323, %v320, %v322
      %329 = vst [vmem:[#allocation2 + $0x60] sm:$0xf] %v324
      %330 = vst [vmem:[#allocation2 + $0x68] sm:$0xf] %v325
      %331 = vst.msk [vmem:[#allocation2 + $0x70] sm:$0xf] %vm207, %v322
      %v332 = vld [vmem:[%s1] sm:$0xff]
      %v333 = vld [vmem:[#allocation2] sm:$0xff]
      %v334 = vld [vmem:[#allocation2 + $0x8] sm:$0xff]
      %v335 = vld [vmem:[#allocation2 + $0x10] sm:$0xff]
      %v336 = vld [vmem:[#allocation2 + $0x18] sm:$0xff]
      %v337 = vld [vmem:[#allocation2 + $0x20] sm:$0xff]
      %v338 = vld [vmem:[#allocation2 + $0x28] sm:$0xff]
      %v339 = vld [vmem:[#allocation2 + $0x30] sm:$0xff]
      %v340 = vld [vmem:[#allocation2 + $0x38] sm:$0xff]
      %v341 = vld [vmem:[#allocation2 + $0x40] sm:$0xff]
      %v342 = vld [vmem:[#allocation2 + $0x48] sm:$0xff]
      %v343 = vld [vmem:[#allocation2 + $0x50] sm:$0xff]
      %v344 = vld [vmem:[#allocation2 + $0x58] sm:$0xff]
      %v345 = vld [vmem:[#allocation2 + $0x60] sm:$0xf]
      %v346 = vld [vmem:[#allocation2 + $0x68] sm:$0xf]
      %v347 = vld [vmem:[#allocation2 + $0x70] sm:$0xf]
      %vm348 = vcmask 293888
      %v350 = vsel %vm348, %v332, 0
      %vm352 = vcmask 1043456
      %v354 = vsel %vm352, %v345, 0
      %v357 = vsel %vm352, %v346, 0
      %v360 = vsel %vm352, %v347, 0
      %362 = vmatprep.subr.mxu0 0.0
      %363 = vmatpush1.msra.mxu0 0.0
      %364 = vmatprep.subr.mxu0 0.0
      %365 = vmatpush1.msra.mxu0 0.0
      %366 = vmatprep.subr.mxu0 0.0
      %367 = vmatpush1.msra.mxu0 0.0
      %368 = vmatprep.subr.mxu0 0.0
      %369 = vmatpush1.msra.mxu0 0.0
      %370 = vmatprep.subr.mxu0 0.0
      %371 = vmatpush1.msra.mxu0 0.0
      %372 = vmatprep.subr.mxu0 0.0
      %373 = vmatpush1.msra.mxu0 0.0
      %374 = vmatprep.subr.mxu0 0.0
      %375 = vmatpush1.msra.mxu0 0.0
      %376 = vmatprep.subr.mxu0 0.0
      %377 = vmatpush1.msra.mxu0 0.0
      %378 = vmatprep.subr.mxu0 0.0
      %379 = vmatpush1.msra.mxu0 0.0
      %380 = vmatprep.subr.mxu0 0.0
      %381 = vmatpush1.msra.mxu0 0.0
      %382 = vmatprep.subr.mxu0 0.0
      %383 = vmatpush1.msra.mxu0 0.0
      %384 = vmatprep.subr.mxu0 %v357
      %385 = vmatpush1.msra.mxu0 %v354
      %386 = vmatprep.subr.mxu0 %v343
      %387 = vmatpush1.msra.mxu0 %v342
      %388 = vmatprep.subr.mxu0 %v340
      %389 = vmatpush1.msra.mxu0 %v339
      %390 = vmatprep.subr.mxu0 %v337
      %391 = vmatpush1.msra.mxu0 %v336
      %392 = vmatprep.subr.mxu0 %v334
      %393 = vmatpush1.msra.mxu0 %v333
      %394 = vmatprep.subr.mxu0 0.0
      %395 = vmatpush2.msra.mxu0 0.0
      %396 = vmatprep.subr.mxu0 0.0
      %397 = vmatpush2.msra.mxu0 0.0
      %398 = vmatprep.subr.mxu0 0.0
      %399 = vmatpush2.msra.mxu0 0.0
      %400 = vmatprep.subr.mxu0 0.0
      %401 = vmatpush2.msra.mxu0 0.0
      %402 = vmatprep.subr.mxu0 0.0
      %403 = vmatpush2.msra.mxu0 0.0
      %404 = vmatprep.subr.mxu0 0.0
      %405 = vmatpush2.msra.mxu0 0.0
      %406 = vmatprep.subr.mxu0 0.0
      %407 = vmatpush2.msra.mxu0 0.0
      %408 = vmatprep.subr.mxu0 0.0
      %409 = vmatpush2.msra.mxu0 0.0
      %410 = vmatprep.subr.mxu0 0.0
      %411 = vmatpush2.msra.mxu0 0.0
      %412 = vmatprep.subr.mxu0 0.0
      %413 = vmatpush2.msra.mxu0 0.0
      %414 = vmatprep.subr.mxu0 0.0
      %415 = vmatpush2.msra.mxu0 0.0
      %416 = vmatprep.subr.mxu0 0.0
      %417 = vmatpush2.msra.mxu0 0.0
      %418 = vmatprep.subr.mxu0 0.0
      %419 = vmatpush2.msra.mxu0 0.0
      %420 = vmatprep.subr.mxu0 0.0
      %421 = vmatpush2.msra.mxu0 0.0
      %422 = vmatprep.subr.mxu0 0.0
      %423 = vmatpush2.msra.mxu0 0.0
      %424 = vmatprep.subr.mxu0 0.0
      %425 = vmatpush2.msra.mxu0 0.0
      %426 = vmatprep.mubr.f32.mxu0 0.0
      %427 = vmatmul.mubr.f32.gmra.mxu0 %v350
      %v428 = vpop.f32.mrf.mxu0
      %v429 = vadd.f32 0.0, %v428
      %v430 = vpop.f32.mrf.mxu0
      %v431 = vadd.f32 0.0, %v430
      %432 = vdwg.mxu0
      %433 = vmatprep.subr.mxu0 0.0
      %434 = vmatpush1.msra.mxu0 0.0
      %435 = vmatprep.subr.mxu0 0.0
      %436 = vmatpush1.msra.mxu0 0.0
      %437 = vmatprep.subr.mxu0 0.0
      %438 = vmatpush1.msra.mxu0 0.0
      %439 = vmatprep.subr.mxu0 0.0
      %440 = vmatpush1.msra.mxu0 0.0
      %441 = vmatprep.subr.mxu0 0.0
      %442 = vmatpush1.msra.mxu0 0.0
      %443 = vmatprep.subr.mxu0 0.0
      %444 = vmatpush1.msra.mxu0 0.0
      %445 = vmatprep.subr.mxu0 0.0
      %446 = vmatpush1.msra.mxu0 0.0
      %447 = vmatprep.subr.mxu0 0.0
      %448 = vmatpush1.msra.mxu0 0.0
      %449 = vmatprep.subr.mxu0 0.0
      %450 = vmatpush1.msra.mxu0 0.0
      %451 = vmatprep.subr.mxu0 0.0
      %452 = vmatpush1.msra.mxu0 0.0
      %453 = vmatprep.subr.mxu0 0.0
      %454 = vmatpush1.msra.mxu0 0.0
      %455 = vmatprep.subr.mxu0 0.0
      %456 = vmatpush1.msra.mxu0 %v360
      %457 = vmatprep.subr.mxu0 0.0
      %458 = vmatpush1.msra.mxu0 %v344
      %459 = vmatprep.subr.mxu0 0.0
      %460 = vmatpush1.msra.mxu0 %v341
      %461 = vmatprep.subr.mxu0 0.0
      %462 = vmatpush1.msra.mxu0 %v338
      %463 = vmatprep.subr.mxu0 0.0
      %464 = vmatpush1.msra.mxu0 %v335
      %465 = vmatprep.subr.mxu0 0.0
      %466 = vmatpush2.msra.mxu0 0.0
      %467 = vmatprep.subr.mxu0 0.0
      %468 = vmatpush2.msra.mxu0 0.0
      %469 = vmatprep.subr.mxu0 0.0
      %470 = vmatpush2.msra.mxu0 0.0
      %471 = vmatprep.subr.mxu0 0.0
      %472 = vmatpush2.msra.mxu0 0.0
      %473 = vmatprep.subr.mxu0 0.0
      %474 = vmatpush2.msra.mxu0 0.0
      %475 = vmatprep.subr.mxu0 0.0
      %476 = vmatpush2.msra.mxu0 0.0
      %477 = vmatprep.subr.mxu0 0.0
      %478 = vmatpush2.msra.mxu0 0.0
      %479 = vmatprep.subr.mxu0 0.0
      %480 = vmatpush2.msra.mxu0 0.0
      %481 = vmatprep.subr.mxu0 0.0
      %482 = vmatpush2.msra.mxu0 0.0
      %483 = vmatprep.subr.mxu0 0.0
      %484 = vmatpush2.msra.mxu0 0.0
      %485 = vmatprep.subr.mxu0 0.0
      %486 = vmatpush2.msra.mxu0 0.0
      %487 = vmatprep.subr.mxu0 0.0
      %488 = vmatpush2.msra.mxu0 0.0
      %489 = vmatprep.subr.mxu0 0.0
      %490 = vmatpush2.msra.mxu0 0.0
      %491 = vmatprep.subr.mxu0 0.0
      %492 = vmatpush2.msra.mxu0 0.0
      %493 = vmatprep.subr.mxu0 0.0
      %494 = vmatpush2.msra.mxu0 0.0
      %495 = vmatprep.subr.mxu0 0.0
      %496 = vmatpush2.msra.mxu0 0.0
      %497 = vmatprep.mubr.f32.mxu0 0.0
      %498 = vmatmul.mubr.f32.gmra.mxu0 %v350
      %v499 = vpop.f32.mrf.mxu0
      %v500 = vadd.f32 0.0, %v499
      %v501 = vpop.f32.mrf.mxu0
      %502 = vdwg.mxu0
      %v504 = vlaneseq
      %v505 = vshrl.u32 %v504, 7
      %v506 = vsub.s32 0, %v505
      %v507 = vrot.slane %v198, %v506
      %v508 = vlaneseq
      %v509 = vshrl.u32 %v508, 7
      %v510 = vsub.s32 1, %v509
      %v511 = vrot.slane %v198, %v510
      %v512 = vlaneseq
      %v513 = vshrl.u32 %v512, 7
      %v514 = vsub.s32 2, %v513
      %v515 = vrot.slane %v198, %v514
      %v519 = vmul.f32 %v429, %v507
      %v520 = vmul.f32 %v431, %v511
      %v521 = vmul.f32 %v500, %v515
      %v522 = vadd.f32 %v519, %v520
      %vm523 = vcmask 261120
      %v524 = vsel %vm523, %v521, 0.0
      %v525 = vadd.f32 %v522, %v524
      %526 = vadd.xlane.f32.xlu0 %v525
      %v527 = vpop.xlane.xlu0 %526
      %v528 = vmul.f32 %v527, 0.00390625
      %v529 = vsub.f32 %v429, %v528
      %v530 = vsub.f32 %v431, %v528
      %v531 = vsub.f32 %v500, %v528
      %v532 = vmul.f32 %v529, %v507
      %v533 = vmul.f32 %v530, %v511
      %v534 = vmul.f32 %v531, %v515
      %v535 = vmul.f32 %v532, %v532
      %v536 = vmul.f32 %v533, %v533
      %v537 = vmul.f32 %v534, %v534
      %v538 = vadd.f32 %v535, %v536
      %v539 = vsel %vm523, %v537, 0.0
      %v540 = vadd.f32 %v538, %v539
      %541 = vadd.xlane.f32.xlu0 %v540
      %v542 = vpop.xlane.xlu0 %541
      %v543 = vmul.f32 %v542, 0.00390625
      %v544 = vadd.f32 %v543, 1e-05
      %v545 = vrsqrt.pop %v544
      %v546 = vmul.f32 %v532, %v545
      %v547 = vmul.f32 %v533, %v545
      %v548 = vmul.f32 %v534, %v545
      %v549 = vmax.f32 %v546, 0.0
      %v550 = vmax.f32 %v547, 0.0
      %v551 = vmax.f32 %v548, 0.0
      %552 = vst [vmem:[#allocation3] sm:$0xff] 0.0
      %553 = vst [vmem:[#allocation3 + $0x8] sm:$0xff] 0.0
      %vm554 = vcmask 703488
      %555 = vst.msk [vmem:[#allocation3 + $0x10] sm:$0xff] %vm554, 0.0
      %559 = vrot.lane.b32.xlu0 %v549, 19
      %v560 = vpop.permute.xlu0 %559
      %561 = vrot.lane.b32.xlu0 %v550, 19
      %v562 = vpop.permute.xlu0 %561
      %563 = vrot.lane.b32.xlu0 %v551, 19
      %v564 = vpop.permute.xlu0 %563
      %vm565 = vcmask 154624
      %v566 = vsel %vm565, %v560, %v562
      %v567 = vsel %vm565, %v562, %v564
      %vm571 = vcmask 1047704
      %572 = vst.msk [vmem:[#allocation3] sm:$0xff] %vm571, %v560
      %573 = vst [vmem:[#allocation3 + $0x8] sm:$0xff] %v566
      %vm574 = vcmask 416768
      %575 = vst.msk [vmem:[#allocation3 + $0x10] sm:$0xff] %vm574, %v567
      %v576 = vld [vmem:[#allocation3] sm:$0xff]
      %v577 = vld [vmem:[#allocation3 + $0x8] sm:$0xff]
      %v578 = vld [vmem:[#allocation3 + $0x10] sm:$0xff]
      %579 = vst [vmem:[#allocation4] sm:$0xff] %v576
      %580 = vst [vmem:[#allocation4 + $0x8] sm:$0xff] %v577
      %581 = vst.msk [vmem:[#allocation4 + $0x10] sm:$0xff] %vm523, %v578
      %585 = vrot.lane.b32.xlu0 %v576, 127
      %v586 = vpop.permute.xlu0 %585
      %587 = vrot.lane.b32.xlu0 %v577, 127
      %v588 = vpop.permute.xlu0 %587
      %589 = vrot.lane.b32.xlu0 %v578, 127
      %v590 = vpop.permute.xlu0 %589
      %v591 = vsel %vm217, %v586, %v588
      %v592 = vsel %vm217, %v588, %v590
      %596 = vst [vmem:[#allocation4 + $0x18] sm:$0xff] %v591
      %597 = vst [vmem:[#allocation4 + $0x20] sm:$0xff] %v592
      %598 = vst.msk [vmem:[#allocation4 + $0x28] sm:$0xff] %vm523, %v590
      %599 = vrot.lane.b32.xlu0 %v576, 126
      %v600 = vpop.permute.xlu0 %599
      %601 = vrot.lane.b32.xlu0 %v577, 126
      %v602 = vpop.permute.xlu0 %601
      %603 = vrot.lane.b32.xlu0 %v578, 126
      %v604 = vpop.permute.xlu0 %603
      %v605 = vsel %vm233, %v600, %v602
      %v606 = vsel %vm233, %v602, %v604
      %610 = vst [vmem:[#allocation4 + $0x30] sm:$0xff] %v605
      %611 = vst [vmem:[#allocation4 + $0x38] sm:$0xff] %v606
      %612 = vst.msk [vmem:[#allocation4 + $0x40] sm:$0xff] %vm523, %v604
      %613 = vrot.lane.b32.xlu0 %v576, 110
      %v614 = vpop.permute.xlu0 %613
      %615 = vrot.lane.b32.xlu0 %v577, 110
      %v616 = vpop.permute.xlu0 %615
      %617 = vrot.lane.b32.xlu0 %v578, 110
      %v618 = vpop.permute.xlu0 %617
      %v619 = vsel %vm248, %v614, %v616
      %v620 = vsel %vm248, %v616, %v618
      %624 = vst [vmem:[#allocation4 + $0x48] sm:$0xff] %v619
      %625 = vst [vmem:[#allocation4 + $0x50] sm:$0xff] %v620
      %626 = vst.msk [vmem:[#allocation4 + $0x58] sm:$0xff] %vm523, %v618
      %627 = vrot.lane.b32.xlu0 %v576, 109
      %v628 = vpop.permute.xlu0 %627
      %629 = vrot.lane.b32.xlu0 %v577, 109
      %v630 = vpop.permute.xlu0 %629
      %631 = vrot.lane.b32.xlu0 %v578, 109
      %v632 = vpop.permute.xlu0 %631
      %v633 = vsel %vm263, %v628, %v630
      %v634 = vsel %vm263, %v630, %v632
      %638 = vst [vmem:[#allocation4 + $0x60] sm:$0xff] %v633
      %639 = vst [vmem:[#allocation4 + $0x68] sm:$0xff] %v634
      %640 = vst.msk [vmem:[#allocation4 + $0x70] sm:$0xff] %vm523, %v632
      %641 = vrot.lane.b32.xlu0 %v576, 108
      %v642 = vpop.permute.xlu0 %641
      %643 = vrot.lane.b32.xlu0 %v577, 108
      %v644 = vpop.permute.xlu0 %643
      %645 = vrot.lane.b32.xlu0 %v578, 108
      %v646 = vpop.permute.xlu0 %645
      %v647 = vsel %vm278, %v642, %v644
      %v648 = vsel %vm278, %v644, %v646
      %652 = vst [vmem:[#allocation4 + $0x78] sm:$0xff] %v647
      %653 = vst [vmem:[#allocation4 + $0x80] sm:$0xff] %v648
      %654 = vst.msk [vmem:[#allocation4 + $0x88] sm:$0xff] %vm523, %v646
      %655 = vrot.lane.b32.xlu0 %v576, 92
      %v656 = vpop.permute.xlu0 %655
      %657 = vrot.lane.b32.xlu0 %v577, 92
      %v658 = vpop.permute.xlu0 %657
      %659 = vrot.lane.b32.xlu0 %v578, 92
      %v660 = vpop.permute.xlu0 %659
      %v661 = vsel %vm293, %v656, %v658
      %v662 = vsel %vm293, %v658, %v660
      %666 = vst [vmem:[#allocation4 + $0x90] sm:$0xff] %v661
      %667 = vst [vmem:[#allocation4 + $0x98] sm:$0xff] %v662
      %668 = vst.msk [vmem:[#allocation4 + $0xa0] sm:$0xff] %vm523, %v660
      %669 = vrot.lane.b32.xlu0 %v576, 91
      %v670 = vpop.permute.xlu0 %669
      %671 = vrot.lane.b32.xlu0 %v577, 91
      %v672 = vpop.permute.xlu0 %671
      %673 = vrot.lane.b32.xlu0 %v578, 91
      %v674 = vpop.permute.xlu0 %673
      %v675 = vsel %vm308, %v670, %v672
      %v676 = vsel %vm308, %v672, %v674
      %680 = vst [vmem:[#allocation4 + $0xa8] sm:$0xff] %v675
      %681 = vst [vmem:[#allocation4 + $0xb0] sm:$0xff] %v676
      %682 = vst.msk [vmem:[#allocation4 + $0xb8] sm:$0xff] %vm523, %v674
      %683 = vrot.lane.b32.xlu0 %v576, 90
      %v684 = vpop.permute.xlu0 %683
      %685 = vrot.lane.b32.xlu0 %v577, 90
      %v686 = vpop.permute.xlu0 %685
      %687 = vrot.lane.b32.xlu0 %v578, 90
      %v688 = vpop.permute.xlu0 %687
      %v689 = vsel %vm323, %v684, %v686
      %v690 = vsel %vm323, %v686, %v688
      %694 = vst [vmem:[#allocation4 + $0xc0] sm:$0xff] %v689
      %695 = vst [vmem:[#allocation4 + $0xc8] sm:$0xff] %v690
      %696 = vst.msk [vmem:[#allocation4 + $0xd0] sm:$0xff] %vm523, %v688
      %v697 = vld [vmem:[%s2] sm:$0xff]
      %v698 = vld [vmem:[#allocation4] sm:$0xff]
      %v699 = vld [vmem:[#allocation4 + $0x8] sm:$0xff]
      %v700 = vld [vmem:[#allocation4 + $0x10] sm:$0xff]
      %v701 = vld [vmem:[#allocation4 + $0x18] sm:$0xff]
      %v702 = vld [vmem:[#allocation4 + $0x20] sm:$0xff]
      %v703 = vld [vmem:[#allocation4 + $0x28] sm:$0xff]
      %v704 = vld [vmem:[#allocation4 + $0x30] sm:$0xff]
      %v705 = vld [vmem:[#allocation4 + $0x38] sm:$0xff]
      %v706 = vld [vmem:[#allocation4 + $0x40] sm:$0xff]
      %v707 = vld [vmem:[#allocation4 + $0x48] sm:$0xff]
      %v708 = vld [vmem:[#allocation4 + $0x50] sm:$0xff]
      %v709 = vld [vmem:[#allocation4 + $0x58] sm:$0xff]
      %v710 = vld [vmem:[#allocation4 + $0x60] sm:$0xff]
      %v711 = vld [vmem:[#allocation4 + $0x68] sm:$0xff]
      %v712 = vld [vmem:[#allocation4 + $0x70] sm:$0xff]
      %v713 = vld [vmem:[#allocation4 + $0x78] sm:$0xff]
      %v714 = vld [vmem:[#allocation4 + $0x80] sm:$0xff]
      %v715 = vld [vmem:[#allocation4 + $0x88] sm:$0xff]
      %v716 = vld [vmem:[#allocation4 + $0x90] sm:$0xff]
      %v717 = vld [vmem:[#allocation4 + $0x98] sm:$0xff]
      %v718 = vld [vmem:[#allocation4 + $0xa0] sm:$0xff]
      %v719 = vld [vmem:[#allocation4 + $0xa8] sm:$0xff]
      %v720 = vld [vmem:[#allocation4 + $0xb0] sm:$0xff]
      %v721 = vld [vmem:[#allocation4 + $0xb8] sm:$0xff]
      %v722 = vld [vmem:[#allocation4 + $0xc0] sm:$0xff]
      %v723 = vld [vmem:[#allocation4 + $0xc8] sm:$0xff]
      %v724 = vld [vmem:[#allocation4 + $0xd0] sm:$0xff]
      %vm725 = vcmask 588800
      %v727 = vsel %vm725, %v697, 0
      %729 = vmatprep.subr.mxu0 0.0
      %730 = vmatpush1.msra.mxu0 0.0
      %731 = vmatprep.subr.mxu0 0.0
      %732 = vmatpush1.msra.mxu0 0.0
      %733 = vmatprep.subr.mxu0 0.0
      %734 = vmatpush1.msra.mxu0 0.0
      %735 = vmatprep.subr.mxu0 0.0
      %736 = vmatpush1.msra.mxu0 0.0
      %737 = vmatprep.subr.mxu0 0.0
      %738 = vmatpush1.msra.mxu0 0.0
      %739 = vmatprep.subr.mxu0 0.0
      %740 = vmatpush1.msra.mxu0 0.0
      %741 = vmatprep.subr.mxu0 0.0
      %742 = vmatpush1.msra.mxu0 0.0
      %743 = vmatprep.subr.mxu0 %v723
      %744 = vmatpush1.msra.mxu0 %v722
      %745 = vmatprep.subr.mxu0 %v720
      %746 = vmatpush1.msra.mxu0 %v719
      %747 = vmatprep.subr.mxu0 %v717
      %748 = vmatpush1.msra.mxu0 %v716
      %749 = vmatprep.subr.mxu0 %v714
      %750 = vmatpush1.msra.mxu0 %v713
      %751 = vmatprep.subr.mxu0 %v711
      %752 = vmatpush1.msra.mxu0 %v710
      %753 = vmatprep.subr.mxu0 %v708
      %754 = vmatpush1.msra.mxu0 %v707
      %755 = vmatprep.subr.mxu0 %v705
      %756 = vmatpush1.msra.mxu0 %v704
      %757 = vmatprep.subr.mxu0 %v702
      %758 = vmatpush1.msra.mxu0 %v701
      %759 = vmatprep.subr.mxu0 %v699
      %760 = vmatpush1.msra.mxu0 %v698
      %761 = vmatprep.subr.mxu0 0.0
      %762 = vmatpush2.msra.mxu0 0.0
      %763 = vmatprep.subr.mxu0 0.0
      %764 = vmatpush2.msra.mxu0 0.0
      %765 = vmatprep.subr.mxu0 0.0
      %766 = vmatpush2.msra.mxu0 0.0
      %767 = vmatprep.subr.mxu0 0.0
      %768 = vmatpush2.msra.mxu0 0.0
      %769 = vmatprep.subr.mxu0 0.0
      %770 = vmatpush2.msra.mxu0 0.0
      %771 = vmatprep.subr.mxu0 0.0
      %772 = vmatpush2.msra.mxu0 0.0
      %773 = vmatprep.subr.mxu0 0.0
      %774 = vmatpush2.msra.mxu0 0.0
      %775 = vmatprep.subr.mxu0 0.0
      %776 = vmatpush2.msra.mxu0 0.0
      %777 = vmatprep.subr.mxu0 0.0
      %778 = vmatpush2.msra.mxu0 0.0
      %779 = vmatprep.subr.mxu0 0.0
      %780 = vmatpush2.msra.mxu0 0.0
      %781 = vmatprep.subr.mxu0 0.0
      %782 = vmatpush2.msra.mxu0 0.0
      %783 = vmatprep.subr.mxu0 0.0
      %784 = vmatpush2.msra.mxu0 0.0
      %785 = vmatprep.subr.mxu0 0.0
      %786 = vmatpush2.msra.mxu0 0.0
      %787 = vmatprep.subr.mxu0 0.0
      %788 = vmatpush2.msra.mxu0 0.0
      %789 = vmatprep.subr.mxu0 0.0
      %790 = vmatpush2.msra.mxu0 0.0
      %791 = vmatprep.subr.mxu0 0.0
      %792 = vmatpush2.msra.mxu0 0.0
      %793 = vmatprep.mubr.f32.mxu0 0.0
      %794 = vmatmul.mubr.f32.gmra.mxu0 %v727
      %v795 = vpop.f32.mrf.mxu0
      %v796 = vadd.f32 0.0, %v795
      %v797 = vpop.f32.mrf.mxu0
      %v798 = vadd.f32 0.0, %v797
      %799 = vdwg.mxu0
      %800 = vmatprep.subr.mxu0 0.0
      %801 = vmatpush1.msra.mxu0 0.0
      %802 = vmatprep.subr.mxu0 0.0
      %803 = vmatpush1.msra.mxu0 0.0
      %804 = vmatprep.subr.mxu0 0.0
      %805 = vmatpush1.msra.mxu0 0.0
      %806 = vmatprep.subr.mxu0 0.0
      %807 = vmatpush1.msra.mxu0 0.0
      %808 = vmatprep.subr.mxu0 0.0
      %809 = vmatpush1.msra.mxu0 0.0
      %810 = vmatprep.subr.mxu0 0.0
      %811 = vmatpush1.msra.mxu0 0.0
      %812 = vmatprep.subr.mxu0 0.0
      %813 = vmatpush1.msra.mxu0 0.0
      %814 = vmatprep.subr.mxu0 0.0
      %815 = vmatpush1.msra.mxu0 %v724
      %816 = vmatprep.subr.mxu0 0.0
      %817 = vmatpush1.msra.mxu0 %v721
      %818 = vmatprep.subr.mxu0 0.0
      %819 = vmatpush1.msra.mxu0 %v718
      %820 = vmatprep.subr.mxu0 0.0
      %821 = vmatpush1.msra.mxu0 %v715
      %822 = vmatprep.subr.mxu0 0.0
      %823 = vmatpush1.msra.mxu0 %v712
      %824 = vmatprep.subr.mxu0 0.0
      %825 = vmatpush1.msra.mxu0 %v709
      %826 = vmatprep.subr.mxu0 0.0
      %827 = vmatpush1.msra.mxu0 %v706
      %828 = vmatprep.subr.mxu0 0.0
      %829 = vmatpush1.msra.mxu0 %v703
      %830 = vmatprep.subr.mxu0 0.0
      %831 = vmatpush1.msra.mxu0 %v700
      %832 = vmatprep.subr.mxu0 0.0
      %833 = vmatpush2.msra.mxu0 0.0
      %834 = vmatprep.subr.mxu0 0.0
      %835 = vmatpush2.msra.mxu0 0.0
      %836 = vmatprep.subr.mxu0 0.0
      %837 = vmatpush2.msra.mxu0 0.0
      %838 = vmatprep.subr.mxu0 0.0
      %839 = vmatpush2.msra.mxu0 0.0
      %840 = vmatprep.subr.mxu0 0.0
      %841 = vmatpush2.msra.mxu0 0.0
      %842 = vmatprep.subr.mxu0 0.0
      %843 = vmatpush2.msra.mxu0 0.0
      %844 = vmatprep.subr.mxu0 0.0
      %845 = vmatpush2.msra.mxu0 0.0
      %846 = vmatprep.subr.mxu0 0.0
      %847 = vmatpush2.msra.mxu0 0.0
      %848 = vmatprep.subr.mxu0 0.0
      %849 = vmatpush2.msra.mxu0 0.0
      %850 = vmatprep.subr.mxu0 0.0
      %851 = vmatpush2.msra.mxu0 0.0
      %852 = vmatprep.subr.mxu0 0.0
      %853 = vmatpush2.msra.mxu0 0.0
      %854 = vmatprep.subr.mxu0 0.0
      %855 = vmatpush2.msra.mxu0 0.0
      %856 = vmatprep.subr.mxu0 0.0
      %857 = vmatpush2.msra.mxu0 0.0
      %858 = vmatprep.subr.mxu0 0.0
      %859 = vmatpush2.msra.mxu0 0.0
      %860 = vmatprep.subr.mxu0 0.0
      %861 = vmatpush2.msra.mxu0 0.0
      %862 = vmatprep.subr.mxu0 0.0
      %863 = vmatpush2.msra.mxu0 0.0
      %864 = vmatprep.mubr.f32.mxu0 0.0
      %865 = vmatmul.mubr.f32.gmra.mxu0 %v727
      %v866 = vpop.f32.mrf.mxu0
      %v867 = vadd.f32 0.0, %v866
      %v868 = vpop.f32.mrf.mxu0
      %869 = vdwg.mxu0
      %v870 = vmul.f32 %v796, %v507
      %v871 = vmul.f32 %v798, %v511
      %v872 = vmul.f32 %v867, %v515
      %v873 = vadd.f32 %v870, %v871
      %v874 = vsel %vm523, %v872, 0.0
      %v875 = vadd.f32 %v873, %v874
      %876 = vadd.xlane.f32.xlu0 %v875
      %v877 = vpop.xlane.xlu0 %876
      %v878 = vmul.f32 %v877, 0.00390625
      %v879 = vsub.f32 %v796, %v878
      %v880 = vsub.f32 %v798, %v878
      %v881 = vsub.f32 %v867, %v878
      %v882 = vmul.f32 %v879, %v507
      %v883 = vmul.f32 %v880, %v511
      %v884 = vmul.f32 %v881, %v515
      %v885 = vmul.f32 %v882, %v882
      %v886 = vmul.f32 %v883, %v883
      %v887 = vmul.f32 %v884, %v884
      %v888 = vadd.f32 %v885, %v886
      %v889 = vsel %vm523, %v887, 0.0
      %v890 = vadd.f32 %v888, %v889
      %891 = vadd.xlane.f32.xlu0 %v890
      %v892 = vpop.xlane.xlu0 %891
      %v893 = vmul.f32 %v892, 0.00390625
      %v894 = vadd.f32 %v893, 1e-05
      %v895 = vrsqrt.pop %v894
      %v896 = vmul.f32 %v882, %v895
      %v897 = vmul.f32 %v883, %v895
      %v898 = vmul.f32 %v884, %v895
      %v899 = vmax.f32 %v896, 0.0
      %v900 = vmax.f32 %v897, 0.0
      %v901 = vmax.f32 %v898, 0.0
      %902 = vst [vmem:[%s197] sm:$0xff] %v899
      %903 = vst [vmem:[%s197 + $0x8] sm:$0xff] %v900
      %904 = vst.msk [vmem:[%s197 + $0x10] sm:$0xff] %vm523, %v901
      %p905 = scmp.lt.s32.totalorder %s15, 1
      %s906 = scalar_select %p905, %s15, 1
      %s907 = smul.addr %s906, 3
      %s908 = smul.addr %s907, 8
      %s909 = scalar_lea.vmem %s4, %s908
      // Predicated region
      $region37: #{double_conv.1} parent=35 // pred_check
        %p910 = pneg %p122
      $region38: #{double_conv.1} parent=35 // pred_check_branch
        %912 = sbr.rel (%p910) target = $region40
      $region39: #{double_conv.1} parent=35 // pred_region
        _
      $region40: #{double_conv.1} parent=35 // pred_fallthru
        _
    $region36: #{double_conv.1} parent=5 // pred_fallthru
      _
    %p913 = scmp.le.s32.totalorder 2, %s10
    // Predicated region
    $region41: #{double_conv.1} parent=5 // pred_check
      %p914 = pneg %p913
    $region42: #{double_conv.1} parent=5 // pred_check_branch
      %916 = sbr.rel (%p914) target = $region44
    $region43: #{double_conv.1} parent=5 // pred_region
      %s917 = ssub.s32 %s10, 2
      // Predicated region
      $region45: #{double_conv.1} parent=43 // pred_check
        %p918 = pneg %p128
      $region46: #{double_conv.1} parent=43 // pred_check_branch
        %920 = sbr.rel (%p918) target = $region48
      $region47: #{double_conv.1} parent=43 // pred_region
        %p921 = scmp.lt.s32.totalorder %s16, 1
        %s922 = scalar_select %p921, %s16, 1
        %s923 = smul.addr %s922, 3
        %s924 = smul.addr %s923, 8
        %s925 = scalar_lea.vmem %s4, %s924
      $region48: #{double_conv.1} parent=43 // pred_fallthru
        _
    $region44: #{double_conv.1} parent=5 // pred_fallthru
      _
  $region6: #{double_conv.1} parent=0 // loop_footer
    %s14 = sadd.s32 1, %s10
  $region7: #{double_conv.1} parent=0 // loop_footer_branch
    %9 = sbr.rel target = $region3
  $region8: #{double_conv.1} parent=0 // loop_exit
    _

</llo_original>
